<compile_context>
chip_gen: v6e
topology: v6e:2x2x1
jax: 0.10.0
libtpu: 0.0.40
codegen_flags: <defaults>
</compile_context>

<pallas_src>
import functools

import jax
import jax.numpy as jnp
from jax import lax
from jax.experimental import pallas as pl
from jax.experimental.pallas import tpu as pltpu

_LANE = 128


def _round_up(n, m):
    return ((n + m - 1) // m) * m


def _cdiv(a, b):
    return (a + b - 1) // b


def _pad_to(a, shape):
    pads = [(0, t - s) for s, t in zip(a.shape, shape)]
    if all(p == (0, 0) for p in pads):
        return a
    return jnp.pad(a, pads)


def _device_kind():
    try:
        return (jax.devices()[0].device_kind or "").lower()
    except Exception:
        return ""


def _num_tensorcores(kind):
    # Only v7x has 2 TensorCores that a "parallel" grid axis can span.
    return 2 if "v7" in kind else 1


def _is_v5e(kind):
    return ("v5 lite" in kind) or ("v5e" in kind) or ("v5litepod" in kind)


def _mlp_kernel(x_ref, slab_ref, out_ref, *, layer_slices, discrete,
                output_size, min_logstd, max_logstd, output_activation):
    """x_ref: (tile_b, state_pad); slab_ref: packed params; out_ref: (tile_b, out_pad).

    layer_slices[i] = (w_row_off, w_rows, cols, b_row_off); all static ints,
    all sublane/lane aligned, so the slab slices are zero-cost views.
    """
    mxu_dtype = x_ref.dtype
    h = x_ref[...]                                    # (tile_b, state_pad)
    n = len(layer_slices)
    out = None
    for li, (w_off, w_rows, cols, b_off) in enumerate(layer_slices):
        w = slab_ref[w_off:w_off + w_rows, 0:cols]    # (in_pad, cols)
        b = slab_ref[b_off:b_off + 1, 0:cols]         # (1, cols)
        acc = jnp.dot(h, w, preferred_element_type=jnp.float32)
        acc = acc + b.astype(jnp.float32)
        if li < n - 1:
            h = jnp.maximum(acc, 0.0).astype(mxu_dtype)   # ReLU, back to MXU dtype
        else:
            out = acc                                     # fused head, f32

    if output_activation is not None:
        act = output_activation(out)
        if discrete:
            out = act
        else:
            colm = lax.broadcasted_iota(jnp.int32, out.shape, 1)
            out = jnp.where(colm < output_size, act, out)   # never touch logstd col

    if not discrete:
        # Column `output_size` of the fused head is the logstd -> clamp it only.
        col = lax.broadcasted_iota(jnp.int32, out.shape, 1)
        out = jnp.where(col == output_size,
                        jnp.clip(out, min_logstd, max_logstd), out)

    out_ref[...] = out.astype(out_ref.dtype)


def net_forward(x, hidden_params, out_params, logstd_params=None, *,
                discrete=True, min_logstd=-0.5, max_logstd=0.5,
                output_activation=None, compute_dtype=None):
    """hidden_params: list of (W [in,out], b [1,out]) per hidden layer.
    out_params: (W_out [hidden, output], b_out [1, output]).
    logstd_params: (W_ls [hidden, 1], b_ls [1, 1]) if not discrete.
    compute_dtype: dtype fed to the MXU (e.g. jnp.bfloat16); defaults to
    x.dtype (f32 on v5e, where bf16 buys nothing)."""
    n_layers = len(hidden_params)
    batch, state_size = x.shape
    hidden_size = hidden_params[0][0].shape[1]
    output_size = out_params[0].shape[1]

    kind = _device_kind()
    num_tc = _num_tensorcores(kind)
    if compute_dtype is None:
        compute_dtype = jnp.float32 if _is_v5e(kind) else x.dtype
    compute_dtype = jnp.dtype(compute_dtype)
    dsize = compute_dtype.itemsize
    # Halve padded-output writeback when computing in bf16; keep f32 otherwise.
    out_dtype = jnp.float32 if dsize >= 4 else compute_dtype
    out_dsize = jnp.dtype(out_dtype).itemsize
    sub_pack = max(8, 32 // dsize)        # sublane pack: 8 f32, 16 bf16, 32 int8/fp8

    state_pad = _round_up(state_size, _LANE)
    h_pad = _round_up(hidden_size, _LANE)
    head_cols = output_size + (0 if discrete else 1)
    out_pad = _round_up(head_cols, _LANE)
    slab_cols = max(h_pad, out_pad)

    # Fused output head (mean [+ logstd] in one matmul).
    if discrete:
        w_head, b_head = out_params
    else:
        assert logstd_params is not None
        w_head = jnp.concatenate([out_params[0], logstd_params[0]], axis=1)
        b_head = jnp.concatenate([out_params[1], logstd_params[1]], axis=1)

    # (weight, bias, padded_in_rows, padded_out_cols) for every matmul.
    layers = []
    in_dims = [state_pad] + [h_pad] * n_layers
    for li, (w, b) in enumerate(hidden_params):
        layers.append((w, b, in_dims[li], h_pad))
    layers.append((w_head, b_head, h_pad, out_pad))

    # ---- pack everything into one lane-aligned slab (weights, then biases) ----
    w_offsets, row = [], 0
    for (_, _, in_p, _) in layers:
        w_offsets.append(row)
        row += in_p                                   # multiples of 128
    b_offsets = []
    for _ in layers:
        b_offsets.append(row)
        row += sub_pack                               # bias block, sublane aligned
    slab_rows = _round_up(row, sub_pack)

    slab = jnp.zeros((slab_rows, slab_cols), compute_dtype)
    layer_slices = []
    for (w, b, in_p, out_p), wo, bo in zip(layers, w_offsets, b_offsets):
        w = jnp.asarray(w).astype(compute_dtype)
        b = jnp.asarray(b).astype(compute_dtype).reshape(1, -1)
        slab = slab.at[wo:wo + w.shape[0], 0:w.shape[1]].set(w)
        slab = slab.at[bo:bo + 1, 0:b.shape[1]].set(b)
        layer_slices.append((wo, in_p, out_p, bo))

    # ---- batch tiling: pick the step count first, then the tile size ----
    slab_bytes = slab_rows * slab_cols * dsize
    bytes_per_row = 2 * (state_pad * dsize + out_pad * out_dsize)  # dbl-buffered x & out
    vmem_budget = 8 * 1024 * 1024          # comfortably under v5e's 16 MiB scoped default
    max_tile_rows = max(sub_pack,
                        ((vmem_budget - 2 * slab_bytes) // bytes_per_row)
                        // sub_pack * sub_pack)

    min_steps = num_tc if (num_tc > 1 and batch >= 64) else 1
    steps = max(min_steps, _cdiv(_round_up(batch, sub_pack), max_tile_rows))
    if num_tc > 1 and steps > 1:
        steps = _round_up(steps, num_tc)   # span both TensorCores on v7x
    tile_b = _round_up(_cdiv(batch, steps), sub_pack)
    b_pad = tile_b * steps

    x_p = _pad_to(x.astype(compute_dtype), (b_pad, state_pad))

    # vmem limit from actual footprint (x/out double-buffered, params conservatively 2x).
    vmem_need = (2 * tile_b * state_pad * dsize
                 + 2 * tile_b * out_pad * out_dsize
                 + 2 * slab_bytes)
    vmem_limit = min(max(int(vmem_need * 3 // 2) + (2 << 20), 4 << 20), 100 << 20)

    kernel = functools.partial(
        _mlp_kernel,
        layer_slices=tuple(layer_slices),
        discrete=discrete,
        output_size=output_size,
        min_logstd=float(min_logstd),
        max_logstd=float(max_logstd),
        output_activation=output_activation,
    )

    grid = (steps,)
    x_spec = pl.BlockSpec((tile_b, state_pad), lambda i: (i, 0))
    out_spec = pl.BlockSpec((tile_b, out_pad), lambda i: (i, 0))

    def _call(single_buffer_params):
        if single_buffer_params:
            slab_spec = pl.BlockSpec(slab.shape, lambda i: (0, 0),
                                     pipeline_mode=pl.Buffered(1))
        else:
            slab_spec = pl.BlockSpec(slab.shape, lambda i: (0, 0))
        return pl.pallas_call(
            kernel,
            out_shape=jax.ShapeDtypeStruct((b_pad, out_pad), out_dtype),
            grid=grid,
            in_specs=[x_spec, slab_spec],
            out_specs=out_spec,
            compiler_params=pltpu.CompilerParams(
                dimension_semantics=("parallel",),
                vmem_limit_bytes=vmem_limit,
            ),
        )(x_p, slab)

    try:
        # Constant-index params: a single VMEM copy is enough.
        result = _call(True)
    except Exception:
        # Fallback if this jax version rejects Buffered(1) for pipelined inputs.
        result = _call(False)

    if discrete:
        return result[:batch, :output_size]
    return (result[:batch, :output_size],
            result[:batch, output_size:output_size + 1])


def _init_params(key, state_size, hidden_size, output_size, n_layers, discrete):
    """Deterministic synthetic init (stand-in for PyTorch's default init)."""
    keys = jax.random.split(key, 2 * (n_layers + 2))
    hidden_params = []
    in_dim = state_size
    k = 0
    for _ in range(n_layers):
        w = jax.random.normal(keys[k], (in_dim, hidden_size), jnp.float32) * 0.1
        b = jax.random.normal(keys[k + 1], (1, hidden_size), jnp.float32) * 0.01
        hidden_params.append((w, b))
        in_dim = hidden_size
        k += 2
    w_out = jax.random.normal(keys[k], (hidden_size, output_size), jnp.float32) * 0.1
    b_out = jax.random.normal(keys[k + 1], (1, output_size), jnp.float32) * 0.01
    k += 2
    logstd_params = None
    if not discrete:
        w_ls = jax.random.normal(keys[k], (hidden_size, 1), jnp.float32) * 0.1
        b_ls = jax.random.normal(keys[k + 1], (1, 1), jnp.float32) * 0.01
        logstd_params = (w_ls, b_ls)
    return hidden_params, (w_out, b_out), logstd_params


def _reference(x, hidden_params, out_params, logstd_params,
               discrete, min_logstd, max_logstd):
    h = x
    for w, b in hidden_params:
        h = jnp.maximum(h @ w + b, 0.0)
    out = h @ out_params[0] + out_params[1]
    if discrete:
        return out
    logstd = jnp.clip(h @ logstd_params[0] + logstd_params[1],
                      min_logstd, max_logstd)
    return out, logstd


if __name__ == "__main__":
    batch, state_size, hidden_size, output_size, n_layers = 8, 16, 32, 4, 2
    min_logstd, max_logstd = -0.5, 0.5

    root = jax.random.PRNGKey(0)
    k_x, k_p, k_xl = jax.random.split(root, 3)
    x = jax.random.normal(k_x, (batch, state_size), jnp.float32)

    # --- discrete=True path (f32) ---
    hid, outp, _ = _init_params(k_p, state_size, hidden_size, output_size,
                                n_layers, discrete=True)
    y = jax.block_until_ready(net_forward(x, hid, outp, discrete=True))
    y_ref = _reference(x, hid, outp, None, True, min_logstd, max_logstd)
    assert y.shape == (batch, output_size)
    assert jnp.allclose(y, y_ref, atol=1e-5, rtol=1e-5)

    # --- discrete=False path (f32): mean + clamped logstd, fused head ---
    hid2, outp2, lsp2 = _init_params(k_p, state_size, hidden_size, output_size,
                                     n_layers, discrete=False)
    mu, logstd = net_forward(x, hid2, outp2, lsp2, discrete=False,
                             min_logstd=min_logstd, max_logstd=max_logstd)
    mu = jax.block_until_ready(mu)
    logstd = jax.block_until_ready(logstd)
    mu_ref, logstd_ref = _reference(x, hid2, outp2, lsp2, False,
                                    min_logstd, max_logstd)
    assert mu.shape == (batch, output_size) and logstd.shape == (batch, 1)
    assert jnp.allclose(mu, mu_ref, atol=1e-5, rtol=1e-5)
    assert jnp.allclose(logstd, logstd_ref, atol=1e-5, rtol=1e-5)

    # --- larger, non-multiple batch: tight padding (300 -> 304/320, not 512),
    #     bf16 operands on the MXU, bf16 writeback ---
    xl = jax.random.normal(k_xl, (300, state_size), jnp.float32)
    mu_l, logstd_l = net_forward(xl, hid2, outp2, lsp2, discrete=False,
                                 min_logstd=min_logstd, max_logstd=max_logstd,
                                 compute_dtype=jnp.bfloat16)
    mu_l = jax.block_until_ready(mu_l)
    logstd_l = jax.block_until_ready(logstd_l)
    mu_lr, logstd_lr = _reference(xl, hid2, outp2, lsp2, False,
                                  min_logstd, max_logstd)
    assert mu_l.shape == (300, output_size) and logstd_l.shape == (300, 1)
    assert jnp.allclose(mu_l.astype(jnp.float32), mu_lr, atol=3e-2, rtol=3e-2)
    assert jnp.allclose(logstd_l.astype(jnp.float32), logstd_lr,
                        atol=3e-2, rtol=3e-2)

    # --- larger batch, f32 end-to-end (generation-default dtype path) ---
    mu_f, logstd_f = net_forward(xl, hid2, outp2, lsp2, discrete=False,
                                 min_logstd=min_logstd, max_logstd=max_logstd)
    mu_f = jax.block_until_ready(mu_f)
    logstd_f = jax.block_until_ready(logstd_f)
    assert jnp.allclose(mu_f, mu_lr, atol=1e-5, rtol=1e-5)
    assert jnp.allclose(logstd_f, logstd_lr, atol=1e-5, rtol=1e-5)

    print("KERNEL_OK")
</pallas_src>

<mosaic_0001>
module attributes {stable_mosaic.version = 11 : i64} {
  func.func @_mlp_kernel(%arg0: i32, %arg1: memref<8x128xf32, #tpu.memory_space<vmem>>, %arg2: memref<408x128xf32, #tpu.memory_space<vmem>>, %arg3: memref<8x128xf32, #tpu.memory_space<vmem>>) attributes {dimension_semantics = [#tpu.dimension_semantics<parallel>], iteration_bounds = array<i64: 1>, scalar_prefetch = 0 : i64, scratch_operands = 0 : i64, tpu.core_type = #tpu.core_type<tc>, window_params = [{transform_indices = @transform_0, window_bounds = array<i64: 8, 128>}, {pipeline_mode = #tpu.pipeline_mode<synchronous>, transform_indices = @transform_1, window_bounds = array<i64: 408, 128>}, {transform_indices = @transform_2, window_bounds = array<i64: 8, 128>}]} {
    %c0 = arith.constant 0 : index
    %c0_0 = arith.constant 0 : index
    %0 = vector.load %arg1[%c0, %c0_0] : memref<8x128xf32, #tpu.memory_space<vmem>>, vector<8x128xf32>
    %c0_1 = arith.constant 0 : index
    %c0_2 = arith.constant 0 : index
    %1 = vector.load %arg2[%c0_1, %c0_2] : memref<408x128xf32, #tpu.memory_space<vmem>>, vector<128x128xf32>
    %c384 = arith.constant 384 : index
    %c0_3 = arith.constant 0 : index
    %2 = vector.load %arg2[%c384, %c0_3] : memref<408x128xf32, #tpu.memory_space<vmem>>, vector<1x128xf32>
    %cst = arith.constant dense<0.000000e+00> : vector<8x128xf32>
    %3 = tpu.matmul %0, %1, %cst {dimension_numbers = #tpu.dot_dimension_numbers<[1], [0], [0], [1], [0, 0, 1, 1], [], []>} : vector<8x128xf32>, vector<128x128xf32>, vector<8x128xf32> -> vector<8x128xf32>
    %4 = vector.broadcast %2 : vector<1x128xf32> to vector<8x128xf32>
    %5 = arith.addf %3, %4 : vector<8x128xf32>
    %cst_4 = arith.constant 0.000000e+00 : f32
    %6 = vector.broadcast %cst_4 : f32 to vector<8x128xf32>
    %7 = arith.maximumf %5, %6 : vector<8x128xf32>
    %c128 = arith.constant 128 : index
    %c0_5 = arith.constant 0 : index
    %8 = vector.load %arg2[%c128, %c0_5] : memref<408x128xf32, #tpu.memory_space<vmem>>, vector<128x128xf32>
    %c392 = arith.constant 392 : index
    %c0_6 = arith.constant 0 : index
    %9 = vector.load %arg2[%c392, %c0_6] : memref<408x128xf32, #tpu.memory_space<vmem>>, vector<1x128xf32>
    %cst_7 = arith.constant dense<0.000000e+00> : vector<8x128xf32>
    %10 = tpu.matmul %7, %8, %cst_7 {dimension_numbers = #tpu.dot_dimension_numbers<[1], [0], [0], [1], [0, 0, 1, 1], [], []>} : vector<8x128xf32>, vector<128x128xf32>, vector<8x128xf32> -> vector<8x128xf32>
    %11 = vector.broadcast %9 : vector<1x128xf32> to vector<8x128xf32>
    %12 = arith.addf %10, %11 : vector<8x128xf32>
    %cst_8 = arith.constant 0.000000e+00 : f32
    %13 = vector.broadcast %cst_8 : f32 to vector<8x128xf32>
    %14 = arith.maximumf %12, %13 : vector<8x128xf32>
    %c256 = arith.constant 256 : index
    %c0_9 = arith.constant 0 : index
    %15 = vector.load %arg2[%c256, %c0_9] : memref<408x128xf32, #tpu.memory_space<vmem>>, vector<128x128xf32>
    %c400 = arith.constant 400 : index
    %c0_10 = arith.constant 0 : index
    %16 = vector.load %arg2[%c400, %c0_10] : memref<408x128xf32, #tpu.memory_space<vmem>>, vector<1x128xf32>
    %cst_11 = arith.constant dense<0.000000e+00> : vector<8x128xf32>
    %17 = tpu.matmul %14, %15, %cst_11 {dimension_numbers = #tpu.dot_dimension_numbers<[1], [0], [0], [1], [0, 0, 1, 1], [], []>} : vector<8x128xf32>, vector<128x128xf32>, vector<8x128xf32> -> vector<8x128xf32>
    %18 = vector.broadcast %16 : vector<1x128xf32> to vector<8x128xf32>
    %19 = arith.addf %17, %18 : vector<8x128xf32>
    %c0_12 = arith.constant 0 : index
    %c0_13 = arith.constant 0 : index
    %20 = vector.load %arg3[%c0_12, %c0_13] : memref<8x128xf32, #tpu.memory_space<vmem>>, vector<8x128xf32>
    tpu.vector_store %arg3[%c0_12, %c0_13], %19 {strides = array<i32>} : memref<8x128xf32, #tpu.memory_space<vmem>>, vector<8x128xf32>,
    return
  }
  func.func @transform_0(%arg0: i32) -> (i32, i32) {
    %c0_i32 = arith.constant 0 : i32
    %c0_i32_0 = arith.constant 0 : i32
    return %arg0, %c0_i32 : i32, i32
  }
  func.func @transform_1(%arg0: i32) -> (i32, i32) {
    %c0_i32 = arith.constant 0 : i32
    %c0_i32_0 = arith.constant 0 : i32
    %c0_i32_1 = arith.constant 0 : i32
    return %c0_i32, %c0_i32_0 : i32, i32
  }
  func.func @transform_2(%arg0: i32) -> (i32, i32) {
    %c0_i32 = arith.constant 0 : i32
    %c0_i32_0 = arith.constant 0 : i32
    return %arg0, %c0_i32 : i32, i32
  }
}

module attributes {stable_mosaic.version = 11 : i64} {
  func.func @_mlp_kernel(%arg0: i32, %arg1: memref<8x128xf32, #tpu.memory_space<vmem>>, %arg2: memref<408x128xf32, #tpu.memory_space<vmem>>, %arg3: memref<8x128xf32, #tpu.memory_space<vmem>>) attributes {dimension_semantics = [#tpu.dimension_semantics<parallel>], iteration_bounds = array<i64: 1>, scalar_prefetch = 0 : i64, scratch_operands = 0 : i64, tpu.core_type = #tpu.core_type<tc>, window_params = [{transform_indices = @transform_0, window_bounds = array<i64: 8, 128>}, {pipeline_mode = #tpu.pipeline_mode<synchronous>, transform_indices = @transform_1, window_bounds = array<i64: 408, 128>}, {transform_indices = @transform_2, window_bounds = array<i64: 8, 128>}]} {
    %c0 = arith.constant 0 : index
    %c0_0 = arith.constant 0 : index
    %0 = vector.load %arg1[%c0, %c0_0] : memref<8x128xf32, #tpu.memory_space<vmem>>, vector<8x128xf32>
    %c0_1 = arith.constant 0 : index
    %c0_2 = arith.constant 0 : index
    %1 = vector.load %arg2[%c0_1, %c0_2] : memref<408x128xf32, #tpu.memory_space<vmem>>, vector<128x128xf32>
    %c384 = arith.constant 384 : index
    %c0_3 = arith.constant 0 : index
    %2 = vector.load %arg2[%c384, %c0_3] : memref<408x128xf32, #tpu.memory_space<vmem>>, vector<1x128xf32>
    %cst = arith.constant dense<0.000000e+00> : vector<8x128xf32>
    %3 = tpu.matmul %0, %1, %cst {dimension_numbers = #tpu.dot_dimension_numbers<[1], [0], [0], [1], [0, 0, 1, 1], [], []>} : vector<8x128xf32>, vector<128x128xf32>, vector<8x128xf32> -> vector<8x128xf32>
    %4 = vector.broadcast %2 : vector<1x128xf32> to vector<8x128xf32>
    %5 = arith.addf %3, %4 : vector<8x128xf32>
    %cst_4 = arith.constant 0.000000e+00 : f32
    %6 = vector.broadcast %cst_4 : f32 to vector<8x128xf32>
    %7 = arith.maximumf %5, %6 : vector<8x128xf32>
    %c128 = arith.constant 128 : index
    %c0_5 = arith.constant 0 : index
    %8 = vector.load %arg2[%c128, %c0_5] : memref<408x128xf32, #tpu.memory_space<vmem>>, vector<128x128xf32>
    %c392 = arith.constant 392 : index
    %c0_6 = arith.constant 0 : index
    %9 = vector.load %arg2[%c392, %c0_6] : memref<408x128xf32, #tpu.memory_space<vmem>>, vector<1x128xf32>
    %cst_7 = arith.constant dense<0.000000e+00> : vector<8x128xf32>
    %10 = tpu.matmul %7, %8, %cst_7 {dimension_numbers = #tpu.dot_dimension_numbers<[1], [0], [0], [1], [0, 0, 1, 1], [], []>} : vector<8x128xf32>, vector<128x128xf32>, vector<8x128xf32> -> vector<8x128xf32>
    %11 = vector.broadcast %9 : vector<1x128xf32> to vector<8x128xf32>
    %12 = arith.addf %10, %11 : vector<8x128xf32>
    %cst_8 = arith.constant 0.000000e+00 : f32
    %13 = vector.broadcast %cst_8 : f32 to vector<8x128xf32>
    %14 = arith.maximumf %12, %13 : vector<8x128xf32>
    %c256 = arith.constant 256 : index
    %c0_9 = arith.constant 0 : index
    %15 = vector.load %arg2[%c256, %c0_9] : memref<408x128xf32, #tpu.memory_space<vmem>>, vector<128x128xf32>
    %c400 = arith.constant 400 : index
    %c0_10 = arith.constant 0 : index
    %16 = vector.load %arg2[%c400, %c0_10] : memref<408x128xf32, #tpu.memory_space<vmem>>, vector<1x128xf32>
    %cst_11 = arith.constant dense<0.000000e+00> : vector<8x128xf32>
    %17 = tpu.matmul %14, %15, %cst_11 {dimension_numbers = #tpu.dot_dimension_numbers<[1], [0], [0], [1], [0, 0, 1, 1], [], []>} : vector<8x128xf32>, vector<128x128xf32>, vector<8x128xf32> -> vector<8x128xf32>
    %18 = vector.broadcast %16 : vector<1x128xf32> to vector<8x128xf32>
    %19 = arith.addf %17, %18 : vector<8x128xf32>
    %c0_12 = arith.constant 0 : index
    %c0_13 = arith.constant 0 : index
    %20 = vector.load %arg3[%c0_12, %c0_13] : memref<8x128xf32, #tpu.memory_space<vmem>>, vector<8x128xf32>
    tpu.vector_store %arg3[%c0_12, %c0_13], %19 {strides = array<i32>} : memref<8x128xf32, #tpu.memory_space<vmem>>, vector<8x128xf32>,
    return
  }
  func.func @transform_0(%arg0: i32) -> (i32, i32) {
    %c0_i32 = arith.constant 0 : i32
    %c0_i32_0 = arith.constant 0 : i32
    return %arg0, %c0_i32 : i32, i32
  }
  func.func @transform_1(%arg0: i32) -> (i32, i32) {
    %c0_i32 = arith.constant 0 : i32
    %c0_i32_0 = arith.constant 0 : i32
    %c0_i32_1 = arith.constant 0 : i32
    return %c0_i32, %c0_i32_0 : i32, i32
  }
  func.func @transform_2(%arg0: i32) -> (i32, i32) {
    %c0_i32 = arith.constant 0 : i32
    %c0_i32_0 = arith.constant 0 : i32
    return %arg0, %c0_i32 : i32, i32
  }
}

</mosaic_0001>

<llo_original>
// kernel: tpu_custom_call.1
$region0: #{tpu_custom_call.1}
  #allocation0 [shape = 'u32[]', space=smem, size = 0x4, offset = 0x4, fixed_abs, tag = 'smem constant byte address 0x4 - core index']
  #allocation1 [shape = 'u32[144,128]{1,0:T(1,128)}', space=vmem, size = 0x12000, scoped, tag = 'internal scratch']
  %s0 = inlined_call_operand.hbm [shape: f32[8,128], index: 0, kind: input, shape index: {}]
  %s1 = inlined_call_operand.hbm [shape: f32[408,128], index: 1, kind: input, shape index: {}]
  %s2 = inlined_call_operand.hbm [shape: f32[8,128], index: 2, kind: output, shape index: {}]
  %s3 = sld [smem:[#allocation0]]
  $region26: #{tpu_custom_call.1} parent=0
    _
  %s5 = ssub.s32 1, %s3
  %s6 = scalar_select 0, %s5, %s3
  $region1: #{tpu_custom_call.1} parent=0
    #allocation2 [shape = 'u8[4096]{0}', space=vmem, size = 0x1000, scoped, tag = 'input window, operand 0, single buffered']
    #allocation3 [shape = 's32[1]{0}', space=sflag, size = 0x4, scoped, tag = 'scoped memory for tpu_custom_call.1']
    #allocation4 [shape = 's32[1]{0}', space=sflag, size = 0x4, scoped, tag = 'scoped memory for tpu_custom_call.1']
    #allocation5 [shape = 'u8[208896]{0}', space=vmem, size = 0x33000, scoped, tag = 'input window, operand 1, single buffered']
    #allocation6 [shape = 's32[1]{0}', space=sflag, size = 0x4, scoped, tag = 'scoped memory for tpu_custom_call.1']
    #allocation7 [shape = 'u8[4096]{0}', space=vmem, size = 0x1000, scoped, tag = 'output window, operand 0, single buffered']
    %7 = vsyncpa [#allocation3], 0
    %8 = vsyncpa [#allocation6], 0
    %9 = vsyncpa [#allocation4], 0
    // Predicated region
    $region2: #{tpu_custom_call.1} parent=1 // pred_check
      _
    $region3: #{tpu_custom_call.1} parent=1 // pred_check_branch
      %11 = sbr.rel (0) target = $region5
    $region4: #{tpu_custom_call.1} parent=1 // pred_region
      %s13 = ssub.s32 128, 128
      %14 = vsyncadd [#allocation3], %s13
      %s16 = sshll.u32 [#allocation2], 4
      %s17 = int_to_ptr.vmem [resolvable:$true] %s16
      %19 = dma.hbm_to_vmem [thread:$0]  %s0, 128, %s17, [#allocation3]
    $region5: #{tpu_custom_call.1} parent=1 // pred_fallthru
      _
    // Predicated region
    $region6: #{tpu_custom_call.1} parent=1 // pred_check
      _
    $region7: #{tpu_custom_call.1} parent=1 // pred_check_branch
      %21 = sbr.rel (0) target = $region9
    $region8: #{tpu_custom_call.1} parent=1 // pred_region
      %s23 = ssub.s32 6528, 6528
      %24 = vsyncadd [#allocation6], %s23
      %s25 = sshll.u32 [#allocation5], 4
      %s26 = int_to_ptr.vmem [resolvable:$true] %s25
      %31 = dma.hbm_to_vmem [thread:$0]  %s1, 6528, %s26, [#allocation6], 128, 128, 8
    $region9: #{tpu_custom_call.1} parent=1 // pred_fallthru
      _
    // Predicated region
    $region10: #{tpu_custom_call.1} parent=1 // pred_check
      _
    $region11: #{tpu_custom_call.1} parent=1 // pred_check_branch
      %33 = sbr.rel (0) target = $region13
    $region12: #{tpu_custom_call.1} parent=1 // pred_region
      %34 = dma.done [#allocation3], 128
    $region13: #{tpu_custom_call.1} parent=1 // pred_fallthru
      _
    // Predicated region
    $region14: #{tpu_custom_call.1} parent=1 // pred_check
      _
    $region15: #{tpu_custom_call.1} parent=1 // pred_check_branch
      %36 = sbr.rel (0) target = $region17
    $region16: #{tpu_custom_call.1} parent=1 // pred_region
      %37 = dma.done [#allocation6], 6528
    $region17: #{tpu_custom_call.1} parent=1 // pred_fallthru
      _
    %v38 = vld [vmem:[#allocation2] sm:$0xff]
    %v39 = vld [vmem:[#allocation5] sm:$0xff]
    %v40 = vld [vmem:[#allocation5 + $0x8] sm:$0xff]
    %v41 = vld [vmem:[#allocation5 + $0x10] sm:$0xff]
    %v42 = vld [vmem:[#allocation5 + $0x18] sm:$0xff]
    %v43 = vld [vmem:[#allocation5 + $0x20] sm:$0xff]
    %v44 = vld [vmem:[#allocation5 + $0x28] sm:$0xff]
    %v45 = vld [vmem:[#allocation5 + $0x30] sm:$0xff]
    %v46 = vld [vmem:[#allocation5 + $0x38] sm:$0xff]
    %v47 = vld [vmem:[#allocation5 + $0x40] sm:$0xff]
    %v48 = vld [vmem:[#allocation5 + $0x48] sm:$0xff]
    %v49 = vld [vmem:[#allocation5 + $0x50] sm:$0xff]
    %v50 = vld [vmem:[#allocation5 + $0x58] sm:$0xff]
    %v51 = vld [vmem:[#allocation5 + $0x60] sm:$0xff]
    %v52 = vld [vmem:[#allocation5 + $0x68] sm:$0xff]
    %v53 = vld [vmem:[#allocation5 + $0x70] sm:$0xff]
    %v54 = vld [vmem:[#allocation5 + $0x78] sm:$0xff]
    %v55 = vld [vmem:[#allocation5 + $0x180] sm:$0x1]
    %v56 = vlaneseq
    %v57 = vshrl.u32 %v56, 7
    %v58 = vsub.s32 0, %v57
    %v59 = vrot.slane %v55, %v58
    %60 = vmatprep.subr.mxu0 0.0
    %61 = vmatpush1.msra.mxu0 %v54
    %62 = vmatprep.subr.mxu0 0.0
    %63 = vmatpush1.msra.mxu0 %v53
    %64 = vmatprep.subr.mxu0 0.0
    %65 = vmatpush1.msra.mxu0 %v52
    %66 = vmatprep.subr.mxu0 0.0
    %67 = vmatpush1.msra.mxu0 %v51
    %68 = vmatprep.subr.mxu0 0.0
    %69 = vmatpush1.msra.mxu0 %v50
    %70 = vmatprep.subr.mxu0 0.0
    %71 = vmatpush1.msra.mxu0 %v49
    %72 = vmatprep.subr.mxu0 0.0
    %73 = vmatpush1.msra.mxu0 %v48
    %74 = vmatprep.subr.mxu0 0.0
    %75 = vmatpush1.msra.mxu0 %v47
    %76 = vmatprep.subr.mxu0 0.0
    %77 = vmatpush1.msra.mxu0 %v46
    %78 = vmatprep.subr.mxu0 0.0
    %79 = vmatpush1.msra.mxu0 %v45
    %80 = vmatprep.subr.mxu0 0.0
    %81 = vmatpush1.msra.mxu0 %v44
    %82 = vmatprep.subr.mxu0 0.0
    %83 = vmatpush1.msra.mxu0 %v43
    %84 = vmatprep.subr.mxu0 0.0
    %85 = vmatpush1.msra.mxu0 %v42
    %86 = vmatprep.subr.mxu0 0.0
    %87 = vmatpush1.msra.mxu0 %v41
    %88 = vmatprep.subr.mxu0 0.0
    %89 = vmatpush1.msra.mxu0 %v40
    %90 = vmatprep.subr.mxu0 0.0
    %91 = vmatpush1.msra.mxu0 %v39
    %92 = vmatprep.subr.mxu0 0.0
    %93 = vmatpush2.msra.mxu0 0.0
    %94 = vmatprep.subr.mxu0 0.0
    %95 = vmatpush2.msra.mxu0 0.0
    %96 = vmatprep.subr.mxu0 0.0
    %97 = vmatpush2.msra.mxu0 0.0
    %98 = vmatprep.subr.mxu0 0.0
    %99 = vmatpush2.msra.mxu0 0.0
    %100 = vmatprep.subr.mxu0 0.0
    %101 = vmatpush2.msra.mxu0 0.0
    %102 = vmatprep.subr.mxu0 0.0
    %103 = vmatpush2.msra.mxu0 0.0
    %104 = vmatprep.subr.mxu0 0.0
    %105 = vmatpush2.msra.mxu0 0.0
    %106 = vmatprep.subr.mxu0 0.0
    %107 = vmatpush2.msra.mxu0 0.0
    %108 = vmatprep.subr.mxu0 0.0
    %109 = vmatpush2.msra.mxu0 0.0
    %110 = vmatprep.subr.mxu0 0.0
    %111 = vmatpush2.msra.mxu0 0.0
    %112 = vmatprep.subr.mxu0 0.0
    %113 = vmatpush2.msra.mxu0 0.0
    %114 = vmatprep.subr.mxu0 0.0
    %115 = vmatpush2.msra.mxu0 0.0
    %116 = vmatprep.subr.mxu0 0.0
    %117 = vmatpush2.msra.mxu0 0.0
    %118 = vmatprep.subr.mxu0 0.0
    %119 = vmatpush2.msra.mxu0 0.0
    %120 = vmatprep.subr.mxu0 0.0
    %121 = vmatpush2.msra.mxu0 0.0
    %122 = vmatprep.subr.mxu0 0.0
    %123 = vmatpush2.msra.mxu0 0.0
    %124 = vmatprep.mubr.f32.mxu0 0.0
    %125 = vmatmul.mubr.f32.gmra.mxu0 %v38
    %v126 = vpop.f32.mrf.mxu0
    %v127 = vadd.f32 %v59, %v126
    %v128 = vpop.f32.mrf.mxu0
    %129 = vdwg.mxu0
    %v130 = vmax.f32 %v127, 0.0
    %v131 = vld [vmem:[#allocation5 + $0x80] sm:$0xff]
    %v132 = vld [vmem:[#allocation5 + $0x88] sm:$0xff]
    %v133 = vld [vmem:[#allocation5 + $0x90] sm:$0xff]
    %v134 = vld [vmem:[#allocation5 + $0x98] sm:$0xff]
    %v135 = vld [vmem:[#allocation5 + $0xa0] sm:$0xff]
    %v136 = vld [vmem:[#allocation5 + $0xa8] sm:$0xff]
    %v137 = vld [vmem:[#allocation5 + $0xb0] sm:$0xff]
    %v138 = vld [vmem:[#allocation5 + $0xb8] sm:$0xff]
    %v139 = vld [vmem:[#allocation5 + $0xc0] sm:$0xff]
    %v140 = vld [vmem:[#allocation5 + $0xc8] sm:$0xff]
    %v141 = vld [vmem:[#allocation5 + $0xd0] sm:$0xff]
    %v142 = vld [vmem:[#allocation5 + $0xd8] sm:$0xff]
    %v143 = vld [vmem:[#allocation5 + $0xe0] sm:$0xff]
    %v144 = vld [vmem:[#allocation5 + $0xe8] sm:$0xff]
    %v145 = vld [vmem:[#allocation5 + $0xf0] sm:$0xff]
    %v146 = vld [vmem:[#allocation5 + $0xf8] sm:$0xff]
    %v147 = vld [vmem:[#allocation5 + $0x188] sm:$0x1]
    %v148 = vlaneseq
    %v149 = vshrl.u32 %v148, 7
    %v150 = vsub.s32 0, %v149
    %v151 = vrot.slane %v147, %v150
    %152 = vmatprep.subr.mxu0 0.0
    %153 = vmatpush1.msra.mxu0 %v146
    %154 = vmatprep.subr.mxu0 0.0
    %155 = vmatpush1.msra.mxu0 %v145
    %156 = vmatprep.subr.mxu0 0.0
    %157 = vmatpush1.msra.mxu0 %v144
    %158 = vmatprep.subr.mxu0 0.0
    %159 = vmatpush1.msra.mxu0 %v143
    %160 = vmatprep.subr.mxu0 0.0
    %161 = vmatpush1.msra.mxu0 %v142
    %162 = vmatprep.subr.mxu0 0.0
    %163 = vmatpush1.msra.mxu0 %v141
    %164 = vmatprep.subr.mxu0 0.0
    %165 = vmatpush1.msra.mxu0 %v140
    %166 = vmatprep.subr.mxu0 0.0
    %167 = vmatpush1.msra.mxu0 %v139
    %168 = vmatprep.subr.mxu0 0.0
    %169 = vmatpush1.msra.mxu0 %v138
    %170 = vmatprep.subr.mxu0 0.0
    %171 = vmatpush1.msra.mxu0 %v137
    %172 = vmatprep.subr.mxu0 0.0
    %173 = vmatpush1.msra.mxu0 %v136
    %174 = vmatprep.subr.mxu0 0.0
    %175 = vmatpush1.msra.mxu0 %v135
    %176 = vmatprep.subr.mxu0 0.0
    %177 = vmatpush1.msra.mxu0 %v134
    %178 = vmatprep.subr.mxu0 0.0
    %179 = vmatpush1.msra.mxu0 %v133
    %180 = vmatprep.subr.mxu0 0.0
    %181 = vmatpush1.msra.mxu0 %v132
    %182 = vmatprep.subr.mxu0 0.0
    %183 = vmatpush1.msra.mxu0 %v131
    %184 = vmatprep.subr.mxu0 0.0
    %185 = vmatpush2.msra.mxu0 0.0
    %186 = vmatprep.subr.mxu0 0.0
    %187 = vmatpush2.msra.mxu0 0.0
    %188 = vmatprep.subr.mxu0 0.0
    %189 = vmatpush2.msra.mxu0 0.0
    %190 = vmatprep.subr.mxu0 0.0
    %191 = vmatpush2.msra.mxu0 0.0
    %192 = vmatprep.subr.mxu0 0.0
    %193 = vmatpush2.msra.mxu0 0.0
    %194 = vmatprep.subr.mxu0 0.0
    %195 = vmatpush2.msra.mxu0 0.0
    %196 = vmatprep.subr.mxu0 0.0
    %197 = vmatpush2.msra.mxu0 0.0
    %198 = vmatprep.subr.mxu0 0.0
    %199 = vmatpush2.msra.mxu0 0.0
    %200 = vmatprep.subr.mxu0 0.0
    %201 = vmatpush2.msra.mxu0 0.0
    %202 = vmatprep.subr.mxu0 0.0
    %203 = vmatpush2.msra.mxu0 0.0
    %204 = vmatprep.subr.mxu0 0.0
    %205 = vmatpush2.msra.mxu0 0.0
    %206 = vmatprep.subr.mxu0 0.0
    %207 = vmatpush2.msra.mxu0 0.0
    %208 = vmatprep.subr.mxu0 0.0
    %209 = vmatpush2.msra.mxu0 0.0
    %210 = vmatprep.subr.mxu0 0.0
    %211 = vmatpush2.msra.mxu0 0.0
    %212 = vmatprep.subr.mxu0 0.0
    %213 = vmatpush2.msra.mxu0 0.0
    %214 = vmatprep.subr.mxu0 0.0
    %215 = vmatpush2.msra.mxu0 0.0
    %216 = vmatprep.mubr.f32.mxu0 0.0
    %217 = vmatmul.mubr.f32.gmra.mxu0 %v130
    %v218 = vpop.f32.mrf.mxu0
    %v219 = vadd.f32 %v151, %v218
    %v220 = vpop.f32.mrf.mxu0
    %221 = vdwg.mxu0
    %v222 = vmax.f32 %v219, 0.0
    %v223 = vld [vmem:[#allocation5 + $0x100] sm:$0xff]
    %v224 = vld [vmem:[#allocation5 + $0x108] sm:$0xff]
    %v225 = vld [vmem:[#allocation5 + $0x110] sm:$0xff]
    %v226 = vld [vmem:[#allocation5 + $0x118] sm:$0xff]
    %v227 = vld [vmem:[#allocation5 + $0x120] sm:$0xff]
    %v228 = vld [vmem:[#allocation5 + $0x128] sm:$0xff]
    %v229 = vld [vmem:[#allocation5 + $0x130] sm:$0xff]
    %v230 = vld [vmem:[#allocation5 + $0x138] sm:$0xff]
    %v231 = vld [vmem:[#allocation5 + $0x140] sm:$0xff]
    %v232 = vld [vmem:[#allocation5 + $0x148] sm:$0xff]
    %v233 = vld [vmem:[#allocation5 + $0x150] sm:$0xff]
    %v234 = vld [vmem:[#allocation5 + $0x158] sm:$0xff]
    %v235 = vld [vmem:[#allocation5 + $0x160] sm:$0xff]
    %v236 = vld [vmem:[#allocation5 + $0x168] sm:$0xff]
    %v237 = vld [vmem:[#allocation5 + $0x170] sm:$0xff]
    %v238 = vld [vmem:[#allocation5 + $0x178] sm:$0xff]
    %v239 = vld [vmem:[#allocation5 + $0x190] sm:$0x1]
    %v240 = vlaneseq
    %v241 = vshrl.u32 %v240, 7
    %v242 = vsub.s32 0, %v241
    %v243 = vrot.slane %v239, %v242
    %244 = vmatprep.subr.mxu0 0.0
    %245 = vmatpush1.msra.mxu0 %v238
    %246 = vmatprep.subr.mxu0 0.0
    %247 = vmatpush1.msra.mxu0 %v237
    %248 = vmatprep.subr.mxu0 0.0
    %249 = vmatpush1.msra.mxu0 %v236
    %250 = vmatprep.subr.mxu0 0.0
    %251 = vmatpush1.msra.mxu0 %v235
    %252 = vmatprep.subr.mxu0 0.0
    %253 = vmatpush1.msra.mxu0 %v234
    %254 = vmatprep.subr.mxu0 0.0
    %255 = vmatpush1.msra.mxu0 %v233
    %256 = vmatprep.subr.mxu0 0.0
    %257 = vmatpush1.msra.mxu0 %v232
    %258 = vmatprep.subr.mxu0 0.0
    %259 = vmatpush1.msra.mxu0 %v231
    %260 = vmatprep.subr.mxu0 0.0
    %261 = vmatpush1.msra.mxu0 %v230
    %262 = vmatprep.subr.mxu0 0.0
    %263 = vmatpush1.msra.mxu0 %v229
    %264 = vmatprep.subr.mxu0 0.0
    %265 = vmatpush1.msra.mxu0 %v228
    %266 = vmatprep.subr.mxu0 0.0
    %267 = vmatpush1.msra.mxu0 %v227
    %268 = vmatprep.subr.mxu0 0.0
    %269 = vmatpush1.msra.mxu0 %v226
    %270 = vmatprep.subr.mxu0 0.0
    %271 = vmatpush1.msra.mxu0 %v225
    %272 = vmatprep.subr.mxu0 0.0
    %273 = vmatpush1.msra.mxu0 %v224
    %274 = vmatprep.subr.mxu0 0.0
    %275 = vmatpush1.msra.mxu0 %v223
    %276 = vmatprep.subr.mxu0 0.0
    %277 = vmatpush2.msra.mxu0 0.0
    %278 = vmatprep.subr.mxu0 0.0
    %279 = vmatpush2.msra.mxu0 0.0
    %280 = vmatprep.subr.mxu0 0.0
    %281 = vmatpush2.msra.mxu0 0.0
    %282 = vmatprep.subr.mxu0 0.0
    %283 = vmatpush2.msra.mxu0 0.0
    %284 = vmatprep.subr.mxu0 0.0
    %285 = vmatpush2.msra.mxu0 0.0
    %286 = vmatprep.subr.mxu0 0.0
    %287 = vmatpush2.msra.mxu0 0.0
    %288 = vmatprep.subr.mxu0 0.0
    %289 = vmatpush2.msra.mxu0 0.0
    %290 = vmatprep.subr.mxu0 0.0
    %291 = vmatpush2.msra.mxu0 0.0
    %292 = vmatprep.subr.mxu0 0.0
    %293 = vmatpush2.msra.mxu0 0.0
    %294 = vmatprep.subr.mxu0 0.0
    %295 = vmatpush2.msra.mxu0 0.0
    %296 = vmatprep.subr.mxu0 0.0
    %297 = vmatpush2.msra.mxu0 0.0
    %298 = vmatprep.subr.mxu0 0.0
    %299 = vmatpush2.msra.mxu0 0.0
    %300 = vmatprep.subr.mxu0 0.0
    %301 = vmatpush2.msra.mxu0 0.0
    %302 = vmatprep.subr.mxu0 0.0
    %303 = vmatpush2.msra.mxu0 0.0
    %304 = vmatprep.subr.mxu0 0.0
    %305 = vmatpush2.msra.mxu0 0.0
    %306 = vmatprep.subr.mxu0 0.0
    %307 = vmatpush2.msra.mxu0 0.0
    %308 = vmatprep.mubr.f32.mxu0 0.0
    %309 = vmatmul.mubr.f32.gmra.mxu0 %v222
    %v310 = vpop.f32.mrf.mxu0
    %v311 = vadd.f32 %v243, %v310
    %v312 = vpop.f32.mrf.mxu0
    %313 = vdwg.mxu0
    %314 = vst [vmem:[#allocation7] sm:$0xff] %v311
    // Predicated region
    $region18: #{tpu_custom_call.1} parent=1 // pred_check
      _
    $region19: #{tpu_custom_call.1} parent=1 // pred_check_branch
      %316 = sbr.rel (0) target = $region21
    $region20: #{tpu_custom_call.1} parent=1 // pred_region
      %s318 = ssub.s32 128, 128
      %319 = vsyncadd [#allocation4], %s318
      %s321 = sshll.u32 [#allocation7], 4
      %s322 = int_to_ptr.vmem [resolvable:$true] %s321
      %324 = dma.vmem_to_hbm [thread:$0]  %s322, 128, %s2, [#allocation4]
    $region21: #{tpu_custom_call.1} parent=1 // pred_fallthru
      _
    // Predicated region
    $region22: #{tpu_custom_call.1} parent=1 // pred_check
      _
    $region23: #{tpu_custom_call.1} parent=1 // pred_check_branch
      %326 = sbr.rel (0) target = $region25
    $region24: #{tpu_custom_call.1} parent=1 // pred_region
      %327 = dma.done [#allocation4], 128
    $region25: #{tpu_custom_call.1} parent=1 // pred_fallthru
      _
    %328 = vsyncpa [#allocation3], 1
    %329 = vsyncpa [#allocation6], 1
    %330 = vsyncpa [#allocation4], 1

// kernel: tpu_custom_call.1
$region0: #{tpu_custom_call.1}
  #allocation0 [shape = 'u32[]', space=smem, size = 0x4, offset = 0x4, fixed_abs, tag = 'smem constant byte address 0x4 - core index']
  #allocation1 [shape = 'u32[144,128]{1,0:T(1,128)}', space=vmem, size = 0x12000, scoped, tag = 'internal scratch']
  %s0 = inlined_call_operand.hbm [shape: f32[8,128], index: 0, kind: input, shape index: {}]
  %s1 = inlined_call_operand.hbm [shape: f32[408,128], index: 1, kind: input, shape index: {}]
  %s2 = inlined_call_operand.hbm [shape: f32[8,128], index: 2, kind: output, shape index: {}]
  %s3 = sld [smem:[#allocation0]]
  $region26: #{tpu_custom_call.1} parent=0
    _
  %s5 = ssub.s32 1, %s3
  %s6 = scalar_select 0, %s5, %s3
  $region1: #{tpu_custom_call.1} parent=0
    #allocation2 [shape = 'u8[4096]{0}', space=vmem, size = 0x1000, scoped, tag = 'input window, operand 0, single buffered']
    #allocation3 [shape = 's32[1]{0}', space=sflag, size = 0x4, scoped, tag = 'scoped memory for tpu_custom_call.1']
    #allocation4 [shape = 's32[1]{0}', space=sflag, size = 0x4, scoped, tag = 'scoped memory for tpu_custom_call.1']
    #allocation5 [shape = 'u8[208896]{0}', space=vmem, size = 0x33000, scoped, tag = 'input window, operand 1, single buffered']
    #allocation6 [shape = 's32[1]{0}', space=sflag, size = 0x4, scoped, tag = 'scoped memory for tpu_custom_call.1']
    #allocation7 [shape = 'u8[4096]{0}', space=vmem, size = 0x1000, scoped, tag = 'output window, operand 0, single buffered']
    %7 = vsyncpa [#allocation3], 0
    %8 = vsyncpa [#allocation6], 0
    %9 = vsyncpa [#allocation4], 0
    // Predicated region
    $region2: #{tpu_custom_call.1} parent=1 // pred_check
      _
    $region3: #{tpu_custom_call.1} parent=1 // pred_check_branch
      %11 = sbr.rel (0) target = $region5
    $region4: #{tpu_custom_call.1} parent=1 // pred_region
      %s13 = ssub.s32 128, 128
      %14 = vsyncadd [#allocation3], %s13
      %s16 = sshll.u32 [#allocation2], 4
      %s17 = int_to_ptr.vmem [resolvable:$true] %s16
      %19 = dma.hbm_to_vmem [thread:$0]  %s0, 128, %s17, [#allocation3]
    $region5: #{tpu_custom_call.1} parent=1 // pred_fallthru
      _
    // Predicated region
    $region6: #{tpu_custom_call.1} parent=1 // pred_check
      _
    $region7: #{tpu_custom_call.1} parent=1 // pred_check_branch
      %21 = sbr.rel (0) target = $region9
    $region8: #{tpu_custom_call.1} parent=1 // pred_region
      %s23 = ssub.s32 6528, 6528
      %24 = vsyncadd [#allocation6], %s23
      %s25 = sshll.u32 [#allocation5], 4
      %s26 = int_to_ptr.vmem [resolvable:$true] %s25
      %31 = dma.hbm_to_vmem [thread:$0]  %s1, 6528, %s26, [#allocation6], 128, 128, 8
    $region9: #{tpu_custom_call.1} parent=1 // pred_fallthru
      _
    // Predicated region
    $region10: #{tpu_custom_call.1} parent=1 // pred_check
      _
    $region11: #{tpu_custom_call.1} parent=1 // pred_check_branch
      %33 = sbr.rel (0) target = $region13
    $region12: #{tpu_custom_call.1} parent=1 // pred_region
      %34 = dma.done [#allocation3], 128
    $region13: #{tpu_custom_call.1} parent=1 // pred_fallthru
      _
    // Predicated region
    $region14: #{tpu_custom_call.1} parent=1 // pred_check
      _
    $region15: #{tpu_custom_call.1} parent=1 // pred_check_branch
      %36 = sbr.rel (0) target = $region17
    $region16: #{tpu_custom_call.1} parent=1 // pred_region
      %37 = dma.done [#allocation6], 6528
    $region17: #{tpu_custom_call.1} parent=1 // pred_fallthru
      _
    %v38 = vld [vmem:[#allocation2] sm:$0xff]
    %v39 = vld [vmem:[#allocation5] sm:$0xff]
    %v40 = vld [vmem:[#allocation5 + $0x8] sm:$0xff]
    %v41 = vld [vmem:[#allocation5 + $0x10] sm:$0xff]
    %v42 = vld [vmem:[#allocation5 + $0x18] sm:$0xff]
    %v43 = vld [vmem:[#allocation5 + $0x20] sm:$0xff]
    %v44 = vld [vmem:[#allocation5 + $0x28] sm:$0xff]
    %v45 = vld [vmem:[#allocation5 + $0x30] sm:$0xff]
    %v46 = vld [vmem:[#allocation5 + $0x38] sm:$0xff]
    %v47 = vld [vmem:[#allocation5 + $0x40] sm:$0xff]
    %v48 = vld [vmem:[#allocation5 + $0x48] sm:$0xff]
    %v49 = vld [vmem:[#allocation5 + $0x50] sm:$0xff]
    %v50 = vld [vmem:[#allocation5 + $0x58] sm:$0xff]
    %v51 = vld [vmem:[#allocation5 + $0x60] sm:$0xff]
    %v52 = vld [vmem:[#allocation5 + $0x68] sm:$0xff]
    %v53 = vld [vmem:[#allocation5 + $0x70] sm:$0xff]
    %v54 = vld [vmem:[#allocation5 + $0x78] sm:$0xff]
    %v55 = vld [vmem:[#allocation5 + $0x180] sm:$0x1]
    %v56 = vlaneseq
    %v57 = vshrl.u32 %v56, 7
    %v58 = vsub.s32 0, %v57
    %v59 = vrot.slane %v55, %v58
    %60 = vmatprep.subr.mxu0 0.0
    %61 = vmatpush1.msra.mxu0 %v54
    %62 = vmatprep.subr.mxu0 0.0
    %63 = vmatpush1.msra.mxu0 %v53
    %64 = vmatprep.subr.mxu0 0.0
    %65 = vmatpush1.msra.mxu0 %v52
    %66 = vmatprep.subr.mxu0 0.0
    %67 = vmatpush1.msra.mxu0 %v51
    %68 = vmatprep.subr.mxu0 0.0
    %69 = vmatpush1.msra.mxu0 %v50
    %70 = vmatprep.subr.mxu0 0.0
    %71 = vmatpush1.msra.mxu0 %v49
    %72 = vmatprep.subr.mxu0 0.0
    %73 = vmatpush1.msra.mxu0 %v48
    %74 = vmatprep.subr.mxu0 0.0
    %75 = vmatpush1.msra.mxu0 %v47
    %76 = vmatprep.subr.mxu0 0.0
    %77 = vmatpush1.msra.mxu0 %v46
    %78 = vmatprep.subr.mxu0 0.0
    %79 = vmatpush1.msra.mxu0 %v45
    %80 = vmatprep.subr.mxu0 0.0
    %81 = vmatpush1.msra.mxu0 %v44
    %82 = vmatprep.subr.mxu0 0.0
    %83 = vmatpush1.msra.mxu0 %v43
    %84 = vmatprep.subr.mxu0 0.0
    %85 = vmatpush1.msra.mxu0 %v42
    %86 = vmatprep.subr.mxu0 0.0
    %87 = vmatpush1.msra.mxu0 %v41
    %88 = vmatprep.subr.mxu0 0.0
    %89 = vmatpush1.msra.mxu0 %v40
    %90 = vmatprep.subr.mxu0 0.0
    %91 = vmatpush1.msra.mxu0 %v39
    %92 = vmatprep.subr.mxu0 0.0
    %93 = vmatpush2.msra.mxu0 0.0
    %94 = vmatprep.subr.mxu0 0.0
    %95 = vmatpush2.msra.mxu0 0.0
    %96 = vmatprep.subr.mxu0 0.0
    %97 = vmatpush2.msra.mxu0 0.0
    %98 = vmatprep.subr.mxu0 0.0
    %99 = vmatpush2.msra.mxu0 0.0
    %100 = vmatprep.subr.mxu0 0.0
    %101 = vmatpush2.msra.mxu0 0.0
    %102 = vmatprep.subr.mxu0 0.0
    %103 = vmatpush2.msra.mxu0 0.0
    %104 = vmatprep.subr.mxu0 0.0
    %105 = vmatpush2.msra.mxu0 0.0
    %106 = vmatprep.subr.mxu0 0.0
    %107 = vmatpush2.msra.mxu0 0.0
    %108 = vmatprep.subr.mxu0 0.0
    %109 = vmatpush2.msra.mxu0 0.0
    %110 = vmatprep.subr.mxu0 0.0
    %111 = vmatpush2.msra.mxu0 0.0
    %112 = vmatprep.subr.mxu0 0.0
    %113 = vmatpush2.msra.mxu0 0.0
    %114 = vmatprep.subr.mxu0 0.0
    %115 = vmatpush2.msra.mxu0 0.0
    %116 = vmatprep.subr.mxu0 0.0
    %117 = vmatpush2.msra.mxu0 0.0
    %118 = vmatprep.subr.mxu0 0.0
    %119 = vmatpush2.msra.mxu0 0.0
    %120 = vmatprep.subr.mxu0 0.0
    %121 = vmatpush2.msra.mxu0 0.0
    %122 = vmatprep.subr.mxu0 0.0
    %123 = vmatpush2.msra.mxu0 0.0
    %124 = vmatprep.mubr.f32.mxu0 0.0
    %125 = vmatmul.mubr.f32.gmra.mxu0 %v38
    %v126 = vpop.f32.mrf.mxu0
    %v127 = vadd.f32 %v59, %v126
    %v128 = vpop.f32.mrf.mxu0
    %129 = vdwg.mxu0
    %v130 = vmax.f32 %v127, 0.0
    %v131 = vld [vmem:[#allocation5 + $0x80] sm:$0xff]
    %v132 = vld [vmem:[#allocation5 + $0x88] sm:$0xff]
    %v133 = vld [vmem:[#allocation5 + $0x90] sm:$0xff]
    %v134 = vld [vmem:[#allocation5 + $0x98] sm:$0xff]
    %v135 = vld [vmem:[#allocation5 + $0xa0] sm:$0xff]
    %v136 = vld [vmem:[#allocation5 + $0xa8] sm:$0xff]
    %v137 = vld [vmem:[#allocation5 + $0xb0] sm:$0xff]
    %v138 = vld [vmem:[#allocation5 + $0xb8] sm:$0xff]
    %v139 = vld [vmem:[#allocation5 + $0xc0] sm:$0xff]
    %v140 = vld [vmem:[#allocation5 + $0xc8] sm:$0xff]
    %v141 = vld [vmem:[#allocation5 + $0xd0] sm:$0xff]
    %v142 = vld [vmem:[#allocation5 + $0xd8] sm:$0xff]
    %v143 = vld [vmem:[#allocation5 + $0xe0] sm:$0xff]
    %v144 = vld [vmem:[#allocation5 + $0xe8] sm:$0xff]
    %v145 = vld [vmem:[#allocation5 + $0xf0] sm:$0xff]
    %v146 = vld [vmem:[#allocation5 + $0xf8] sm:$0xff]
    %v147 = vld [vmem:[#allocation5 + $0x188] sm:$0x1]
    %v148 = vlaneseq
    %v149 = vshrl.u32 %v148, 7
    %v150 = vsub.s32 0, %v149
    %v151 = vrot.slane %v147, %v150
    %152 = vmatprep.subr.mxu0 0.0
    %153 = vmatpush1.msra.mxu0 %v146
    %154 = vmatprep.subr.mxu0 0.0
    %155 = vmatpush1.msra.mxu0 %v145
    %156 = vmatprep.subr.mxu0 0.0
    %157 = vmatpush1.msra.mxu0 %v144
    %158 = vmatprep.subr.mxu0 0.0
    %159 = vmatpush1.msra.mxu0 %v143
    %160 = vmatprep.subr.mxu0 0.0
    %161 = vmatpush1.msra.mxu0 %v142
    %162 = vmatprep.subr.mxu0 0.0
    %163 = vmatpush1.msra.mxu0 %v141
    %164 = vmatprep.subr.mxu0 0.0
    %165 = vmatpush1.msra.mxu0 %v140
    %166 = vmatprep.subr.mxu0 0.0
    %167 = vmatpush1.msra.mxu0 %v139
    %168 = vmatprep.subr.mxu0 0.0
    %169 = vmatpush1.msra.mxu0 %v138
    %170 = vmatprep.subr.mxu0 0.0
    %171 = vmatpush1.msra.mxu0 %v137
    %172 = vmatprep.subr.mxu0 0.0
    %173 = vmatpush1.msra.mxu0 %v136
    %174 = vmatprep.subr.mxu0 0.0
    %175 = vmatpush1.msra.mxu0 %v135
    %176 = vmatprep.subr.mxu0 0.0
    %177 = vmatpush1.msra.mxu0 %v134
    %178 = vmatprep.subr.mxu0 0.0
    %179 = vmatpush1.msra.mxu0 %v133
    %180 = vmatprep.subr.mxu0 0.0
    %181 = vmatpush1.msra.mxu0 %v132
    %182 = vmatprep.subr.mxu0 0.0
    %183 = vmatpush1.msra.mxu0 %v131
    %184 = vmatprep.subr.mxu0 0.0
    %185 = vmatpush2.msra.mxu0 0.0
    %186 = vmatprep.subr.mxu0 0.0
    %187 = vmatpush2.msra.mxu0 0.0
    %188 = vmatprep.subr.mxu0 0.0
    %189 = vmatpush2.msra.mxu0 0.0
    %190 = vmatprep.subr.mxu0 0.0
    %191 = vmatpush2.msra.mxu0 0.0
    %192 = vmatprep.subr.mxu0 0.0
    %193 = vmatpush2.msra.mxu0 0.0
    %194 = vmatprep.subr.mxu0 0.0
    %195 = vmatpush2.msra.mxu0 0.0
    %196 = vmatprep.subr.mxu0 0.0
    %197 = vmatpush2.msra.mxu0 0.0
    %198 = vmatprep.subr.mxu0 0.0
    %199 = vmatpush2.msra.mxu0 0.0
    %200 = vmatprep.subr.mxu0 0.0
    %201 = vmatpush2.msra.mxu0 0.0
    %202 = vmatprep.subr.mxu0 0.0
    %203 = vmatpush2.msra.mxu0 0.0
    %204 = vmatprep.subr.mxu0 0.0
    %205 = vmatpush2.msra.mxu0 0.0
    %206 = vmatprep.subr.mxu0 0.0
    %207 = vmatpush2.msra.mxu0 0.0
    %208 = vmatprep.subr.mxu0 0.0
    %209 = vmatpush2.msra.mxu0 0.0
    %210 = vmatprep.subr.mxu0 0.0
    %211 = vmatpush2.msra.mxu0 0.0
    %212 = vmatprep.subr.mxu0 0.0
    %213 = vmatpush2.msra.mxu0 0.0
    %214 = vmatprep.subr.mxu0 0.0
    %215 = vmatpush2.msra.mxu0 0.0
    %216 = vmatprep.mubr.f32.mxu0 0.0
    %217 = vmatmul.mubr.f32.gmra.mxu0 %v130
    %v218 = vpop.f32.mrf.mxu0
    %v219 = vadd.f32 %v151, %v218
    %v220 = vpop.f32.mrf.mxu0
    %221 = vdwg.mxu0
    %v222 = vmax.f32 %v219, 0.0
    %v223 = vld [vmem:[#allocation5 + $0x100] sm:$0xff]
    %v224 = vld [vmem:[#allocation5 + $0x108] sm:$0xff]
    %v225 = vld [vmem:[#allocation5 + $0x110] sm:$0xff]
    %v226 = vld [vmem:[#allocation5 + $0x118] sm:$0xff]
    %v227 = vld [vmem:[#allocation5 + $0x120] sm:$0xff]
    %v228 = vld [vmem:[#allocation5 + $0x128] sm:$0xff]
    %v229 = vld [vmem:[#allocation5 + $0x130] sm:$0xff]
    %v230 = vld [vmem:[#allocation5 + $0x138] sm:$0xff]
    %v231 = vld [vmem:[#allocation5 + $0x140] sm:$0xff]
    %v232 = vld [vmem:[#allocation5 + $0x148] sm:$0xff]
    %v233 = vld [vmem:[#allocation5 + $0x150] sm:$0xff]
    %v234 = vld [vmem:[#allocation5 + $0x158] sm:$0xff]
    %v235 = vld [vmem:[#allocation5 + $0x160] sm:$0xff]
    %v236 = vld [vmem:[#allocation5 + $0x168] sm:$0xff]
    %v237 = vld [vmem:[#allocation5 + $0x170] sm:$0xff]
    %v238 = vld [vmem:[#allocation5 + $0x178] sm:$0xff]
    %v239 = vld [vmem:[#allocation5 + $0x190] sm:$0x1]
    %v240 = vlaneseq
    %v241 = vshrl.u32 %v240, 7
    %v242 = vsub.s32 0, %v241
    %v243 = vrot.slane %v239, %v242
    %244 = vmatprep.subr.mxu0 0.0
    %245 = vmatpush1.msra.mxu0 %v238
    %246 = vmatprep.subr.mxu0 0.0
    %247 = vmatpush1.msra.mxu0 %v237
    %248 = vmatprep.subr.mxu0 0.0
    %249 = vmatpush1.msra.mxu0 %v236
    %250 = vmatprep.subr.mxu0 0.0
    %251 = vmatpush1.msra.mxu0 %v235
    %252 = vmatprep.subr.mxu0 0.0
    %253 = vmatpush1.msra.mxu0 %v234
    %254 = vmatprep.subr.mxu0 0.0
    %255 = vmatpush1.msra.mxu0 %v233
    %256 = vmatprep.subr.mxu0 0.0
    %257 = vmatpush1.msra.mxu0 %v232
    %258 = vmatprep.subr.mxu0 0.0
    %259 = vmatpush1.msra.mxu0 %v231
    %260 = vmatprep.subr.mxu0 0.0
    %261 = vmatpush1.msra.mxu0 %v230
    %262 = vmatprep.subr.mxu0 0.0
    %263 = vmatpush1.msra.mxu0 %v229
    %264 = vmatprep.subr.mxu0 0.0
    %265 = vmatpush1.msra.mxu0 %v228
    %266 = vmatprep.subr.mxu0 0.0
    %267 = vmatpush1.msra.mxu0 %v227
    %268 = vmatprep.subr.mxu0 0.0
    %269 = vmatpush1.msra.mxu0 %v226
    %270 = vmatprep.subr.mxu0 0.0
    %271 = vmatpush1.msra.mxu0 %v225
    %272 = vmatprep.subr.mxu0 0.0
    %273 = vmatpush1.msra.mxu0 %v224
    %274 = vmatprep.subr.mxu0 0.0
    %275 = vmatpush1.msra.mxu0 %v223
    %276 = vmatprep.subr.mxu0 0.0
    %277 = vmatpush2.msra.mxu0 0.0
    %278 = vmatprep.subr.mxu0 0.0
    %279 = vmatpush2.msra.mxu0 0.0
    %280 = vmatprep.subr.mxu0 0.0
    %281 = vmatpush2.msra.mxu0 0.0
    %282 = vmatprep.subr.mxu0 0.0
    %283 = vmatpush2.msra.mxu0 0.0
    %284 = vmatprep.subr.mxu0 0.0
    %285 = vmatpush2.msra.mxu0 0.0
    %286 = vmatprep.subr.mxu0 0.0
    %287 = vmatpush2.msra.mxu0 0.0
    %288 = vmatprep.subr.mxu0 0.0
    %289 = vmatpush2.msra.mxu0 0.0
    %290 = vmatprep.subr.mxu0 0.0
    %291 = vmatpush2.msra.mxu0 0.0
    %292 = vmatprep.subr.mxu0 0.0
    %293 = vmatpush2.msra.mxu0 0.0
    %294 = vmatprep.subr.mxu0 0.0
    %295 = vmatpush2.msra.mxu0 0.0
    %296 = vmatprep.subr.mxu0 0.0
    %297 = vmatpush2.msra.mxu0 0.0
    %298 = vmatprep.subr.mxu0 0.0
    %299 = vmatpush2.msra.mxu0 0.0
    %300 = vmatprep.subr.mxu0 0.0
    %301 = vmatpush2.msra.mxu0 0.0
    %302 = vmatprep.subr.mxu0 0.0
    %303 = vmatpush2.msra.mxu0 0.0
    %304 = vmatprep.subr.mxu0 0.0
    %305 = vmatpush2.msra.mxu0 0.0
    %306 = vmatprep.subr.mxu0 0.0
    %307 = vmatpush2.msra.mxu0 0.0
    %308 = vmatprep.mubr.f32.mxu0 0.0
    %309 = vmatmul.mubr.f32.gmra.mxu0 %v222
    %v310 = vpop.f32.mrf.mxu0
    %v311 = vadd.f32 %v243, %v310
    %v312 = vpop.f32.mrf.mxu0
    %313 = vdwg.mxu0
    %314 = vst [vmem:[#allocation7] sm:$0xff] %v311
    // Predicated region
    $region18: #{tpu_custom_call.1} parent=1 // pred_check
      _
    $region19: #{tpu_custom_call.1} parent=1 // pred_check_branch
      %316 = sbr.rel (0) target = $region21
    $region20: #{tpu_custom_call.1} parent=1 // pred_region
      %s318 = ssub.s32 128, 128
      %319 = vsyncadd [#allocation4], %s318
      %s321 = sshll.u32 [#allocation7], 4
      %s322 = int_to_ptr.vmem [resolvable:$true] %s321
      %324 = dma.vmem_to_hbm [thread:$0]  %s322, 128, %s2, [#allocation4]
    $region21: #{tpu_custom_call.1} parent=1 // pred_fallthru
      _
    // Predicated region
    $region22: #{tpu_custom_call.1} parent=1 // pred_check
      _
    $region23: #{tpu_custom_call.1} parent=1 // pred_check_branch
      %326 = sbr.rel (0) target = $region25
    $region24: #{tpu_custom_call.1} parent=1 // pred_region
      %327 = dma.done [#allocation4], 128
    $region25: #{tpu_custom_call.1} parent=1 // pred_fallthru
      _
    %328 = vsyncpa [#allocation3], 1
    %329 = vsyncpa [#allocation6], 1
    %330 = vsyncpa [#allocation4], 1

</llo_original>
